<compile_context>
chip_gen: v6e
topology: v6e:2x2x1
jax: 0.10.0
libtpu: 0.0.40
codegen_flags: <defaults>
</compile_context>

<pallas_src>
import jax
import jax.numpy as jnp
from jax import lax
from jax.experimental import pallas as pl
from jax.experimental.pallas import tpu as pltpu


def mlp_context_encoder_kernel(codes_ref, tab_ref, w_ref, b_ref, o_ref):
    # Static shapes:
    #   codes_ref : (batch, 2*k*n) int32   codes_rep[b, p] = code for block p//n
    #   tab_ref   : (2*k*n, 2*k*nembed) f32  block-diagonal [cnt]*k + [val]*k
    #   w_ref     : (k*nembed, nhid) f32     (pre-transposed linear weight)
    #   b_ref     : (1, nhid) f32
    #   o_ref     : (1, batch, nhid) f32
    batch, pos = codes_ref.shape
    half = tab_ref.shape[1] // 2                                  # k*nembed

    # One-hot build: single unmasked compare + cast (lane-major codes).
    iota = lax.broadcasted_iota(jnp.int32, (batch, pos), 1)
    onehot = (iota == codes_ref[...]).astype(jnp.float32)         # (batch, 2kn)

    # Both embedding lookups as ONE MXU dot against the block-diagonal table.
    # Result columns [0:half]  == cnt_emb flattened as (b, j*nembed + e)
    #               [half:2*half] == val_emb flattened the same way.
    emb = jnp.dot(onehot, tab_ref[...],
                  preferred_element_type=jnp.float32)             # (batch, 2*k*nembed)

    # h = cnt_emb * val_emb ; flatten order already matches transpose(0,1).view.
    t = jnp.tanh(emb[:, :half] * emb[:, half:])                   # (batch, k*nembed)

    # Final linear: one native (batch, k*nembed) @ (k*nembed, nhid) MXU dot.
    out = jnp.dot(t, w_ref[...], preferred_element_type=jnp.float32) + b_ref[...]
    o_ref[0] = out.astype(o_ref.dtype)


def mlp_context_encoder_forward(ctx, cnt_table, val_table, w_lin, b_lin):
    """ctx: (2k, batch) int; tables: (n, nembed); w_lin: (nhid, k*nembed); b_lin: (nhid,)."""
    two_k, batch = ctx.shape
    k = two_k // 2
    n, nembed = cnt_table.shape
    nhid = w_lin.shape[0]
    kn2 = 2 * k * n
    ke2 = 2 * k * nembed

    # ---- wrapper-side layout plumbing (tiny tensors, done once per call) ----
    ctx_i = ctx.astype(jnp.int32)
    cnt_idx = ctx_i[0::2, :]                                      # (k, batch)
    val_idx = ctx_i[1::2, :]                                      # (k, batch)
    off_cnt = (jnp.arange(k, dtype=jnp.int32) * n)[:, None]       # (k, 1)
    off_val = ((jnp.arange(k, dtype=jnp.int32) + k) * n)[:, None]
    codes = jnp.concatenate([(cnt_idx + off_cnt).T,
                             (val_idx + off_val).T], axis=1)      # (batch, 2k)
    codes_rep = jnp.repeat(codes, n, axis=1).astype(jnp.int32)    # (batch, 2kn)

    # Block-diagonal table: rows j*n..(j+1)*n-1 x cols j*nembed..(j+1)*nembed-1
    # hold cnt_table for j<k and val_table for j>=k.
    blocks = [cnt_table] * k + [val_table] * k
    big_tab = jnp.zeros((kn2, ke2), jnp.float32)
    for j, blk in enumerate(blocks):
        big_tab = big_tab.at[j * n:(j + 1) * n,
                             j * nembed:(j + 1) * nembed].set(blk)

    # Pre-transpose the linear weight: w_t[j*nembed+e, o] == w_lin[o, j*nembed+e]
    w_t = w_lin.T                                                 # (k*nembed, nhid)
    b2 = b_lin.reshape(1, nhid)

    grid_spec = pltpu.PrefetchScalarGridSpec(
        num_scalar_prefetch=0,
        grid=(1,),                                                # single fused step
        in_specs=[
            pl.BlockSpec((batch, kn2), lambda i: (0, 0)),         # lane-major codes
            pl.BlockSpec((kn2, ke2), lambda i: (0, 0)),           # block-diag tables
            pl.BlockSpec((k * nembed, nhid), lambda i: (0, 0)),   # linear weight^T
            pl.BlockSpec((1, nhid), lambda i: (0, 0)),            # linear bias
        ],
        out_specs=pl.BlockSpec((1, batch, nhid), lambda i: (0, 0, 0)),
    )

    # Advisory cost hint (this call is tiny; keep XLA from over-scheduling it).
    flops = 2 * batch * kn2 * ke2 + 2 * batch * (k * nembed) * nhid
    bytes_accessed = 4 * (batch * kn2 + kn2 * ke2 + k * nembed * nhid
                          + nhid + batch * nhid)
    cost = pl.CostEstimate(flops=flops,
                           transcendentals=batch * k * nembed,
                           bytes_accessed=bytes_accessed)

    return pl.pallas_call(
        mlp_context_encoder_kernel,
        grid_spec=grid_spec,
        out_shape=jax.ShapeDtypeStruct((1, batch, nhid), jnp.float32),
        compiler_params=pltpu.CompilerParams(
            dimension_semantics=("arbitrary",)),
        cost_estimate=cost,
    )(codes_rep, big_tab, w_t, b2)


if __name__ == "__main__":
    # Small shapes consistent with the module.
    n, k, nembed, nhid = 10, 4, 32, 128
    batch = 8
    init_range = 0.1

    key = jax.random.PRNGKey(0)
    k1, k2, k3, k4, k5 = jax.random.split(key, 5)

    ctx = jax.random.randint(k1, (2 * k, batch), 0, n, dtype=jnp.int32)
    cnt_table = jax.random.uniform(k2, (n, nembed), jnp.float32, -init_range, init_range)
    val_table = jax.random.uniform(k3, (n, nembed), jnp.float32, -init_range, init_range)
    w_lin = jax.random.uniform(k4, (nhid, k * nembed), jnp.float32, -init_range, init_range)
    b_lin = jax.random.uniform(k5, (nhid,), jnp.float32, -init_range, init_range)

    ctx_h = mlp_context_encoder_forward(ctx, cnt_table, val_table, w_lin, b_lin)
    jax.block_until_ready(ctx_h)

    # Pure-JAX reference mirroring the PyTorch forward exactly.
    cnt = ctx[0::2, :]                                  # (k, batch)
    val = ctx[1::2, :]
    cnt_emb = cnt_table[cnt]                            # (k, batch, nembed)
    val_emb = val_table[val]
    h = cnt_emb * val_emb
    h = jnp.transpose(h, (1, 0, 2)).reshape(batch, k * nembed)
    ref = (jnp.tanh(h) @ w_lin.T + b_lin)[None]         # (1, batch, nhid)

    assert ctx_h.shape == (1, batch, nhid)
    assert jnp.allclose(ctx_h, ref, atol=1e-5, rtol=1e-5)
    print("KERNEL_OK")
</pallas_src>

<mosaic_0001>
module attributes {stable_mosaic.version = 11 : i64} {
  func.func @mlp_context_encoder_kernel(%arg0: i32, %arg1: memref<8x80xi32, #tpu.memory_space<vmem>>, %arg2: memref<80x256xf32, #tpu.memory_space<vmem>>, %arg3: memref<128x128xf32, #tpu.memory_space<vmem>>, %arg4: memref<1x128xf32, #tpu.memory_space<vmem>>, %arg5: memref<1x8x128xf32, #tpu.memory_space<vmem>>) attributes {dimension_semantics = [#tpu.dimension_semantics<arbitrary>], iteration_bounds = array<i64: 1>, scalar_prefetch = 0 : i64, scratch_operands = 0 : i64, tpu.core_type = #tpu.core_type<tc>, window_params = [{pipeline_mode = #tpu.pipeline_mode<synchronous>, transform_indices = @transform_0, window_bounds = array<i64: 8, 80>}, {pipeline_mode = #tpu.pipeline_mode<synchronous>, transform_indices = @transform_1, window_bounds = array<i64: 80, 256>}, {pipeline_mode = #tpu.pipeline_mode<synchronous>, transform_indices = @transform_2, window_bounds = array<i64: 128, 128>}, {pipeline_mode = #tpu.pipeline_mode<synchronous>, transform_indices = @transform_3, window_bounds = array<i64: 1, 128>}, {pipeline_mode = #tpu.pipeline_mode<synchronous>, transform_indices = @transform_4, window_bounds = array<i64: 1, 8, 128>}]} {
    %0 = tpu.iota {dimensions = array<i32: 1>} : vector<8x80xi32>
    %c0 = arith.constant 0 : index
    %c0_0 = arith.constant 0 : index
    %1 = vector.load %arg1[%c0, %c0_0] : memref<8x80xi32, #tpu.memory_space<vmem>>, vector<8x80xi32>
    %2 = arith.cmpi eq, %0, %1 : vector<8x80xi32>
    %3 = arith.extui %2 : vector<8x80xi1> to vector<8x80xi32>
    %4 = arith.sitofp %3 : vector<8x80xi32> to vector<8x80xf32>
    %c0_1 = arith.constant 0 : index
    %c0_2 = arith.constant 0 : index
    %5 = vector.load %arg2[%c0_1, %c0_2] : memref<80x256xf32, #tpu.memory_space<vmem>>, vector<80x256xf32>
    %cst = arith.constant dense<0.000000e+00> : vector<8x256xf32>
    %6 = tpu.matmul %4, %5, %cst {dimension_numbers = #tpu.dot_dimension_numbers<[1], [0], [0], [1], [0, 0, 1, 1], [], []>} : vector<8x80xf32>, vector<80x256xf32>, vector<8x256xf32> -> vector<8x256xf32>
    %7 = vector.extract_strided_slice %6 {offsets = [0, 0], sizes = [8, 128], strides = [1, 1]} : vector<8x256xf32> to vector<8x128xf32>
    %8 = vector.extract_strided_slice %6 {offsets = [0, 128], sizes = [8, 128], strides = [1, 1]} : vector<8x256xf32> to vector<8x128xf32>
    %9 = arith.mulf %7, %8 : vector<8x128xf32>
    %10 = math.tanh %9 : vector<8x128xf32>
    %c0_3 = arith.constant 0 : index
    %c0_4 = arith.constant 0 : index
    %11 = vector.load %arg3[%c0_3, %c0_4] : memref<128x128xf32, #tpu.memory_space<vmem>>, vector<128x128xf32>
    %cst_5 = arith.constant dense<0.000000e+00> : vector<8x128xf32>
    %12 = tpu.matmul %10, %11, %cst_5 {dimension_numbers = #tpu.dot_dimension_numbers<[1], [0], [0], [1], [0, 0, 1, 1], [], []>} : vector<8x128xf32>, vector<128x128xf32>, vector<8x128xf32> -> vector<8x128xf32>
    %c0_6 = arith.constant 0 : index
    %c0_7 = arith.constant 0 : index
    %13 = vector.load %arg4[%c0_6, %c0_7] : memref<1x128xf32, #tpu.memory_space<vmem>>, vector<1x128xf32>
    %14 = vector.broadcast %13 : vector<1x128xf32> to vector<8x128xf32>
    %15 = arith.addf %12, %14 : vector<8x128xf32>
    %c0_8 = arith.constant 0 : index
    %c0_9 = arith.constant 0 : index
    %c0_10 = arith.constant 0 : index
    %16 = vector.load %arg5[%c0_8, %c0_9, %c0_10] : memref<1x8x128xf32, #tpu.memory_space<vmem>>, vector<1x8x128xf32>
    %17 = vector.shape_cast %16 : vector<1x8x128xf32> to vector<8x128xf32>
    %18 = vector.shape_cast %15 : vector<8x128xf32> to vector<1x8x128xf32>
    tpu.vector_store %arg5[%c0_8, %c0_9, %c0_10], %18 {strides = array<i32>} : memref<1x8x128xf32, #tpu.memory_space<vmem>>, vector<1x8x128xf32>,
    return
  }
  func.func @transform_0(%arg0: i32) -> (i32, i32) {
    %c0_i32 = arith.constant 0 : i32
    %c0_i32_0 = arith.constant 0 : i32
    %c0_i32_1 = arith.constant 0 : i32
    return %c0_i32, %c0_i32_0 : i32, i32
  }
  func.func @transform_1(%arg0: i32) -> (i32, i32) {
    %c0_i32 = arith.constant 0 : i32
    %c0_i32_0 = arith.constant 0 : i32
    %c0_i32_1 = arith.constant 0 : i32
    return %c0_i32, %c0_i32_0 : i32, i32
  }
  func.func @transform_2(%arg0: i32) -> (i32, i32) {
    %c0_i32 = arith.constant 0 : i32
    %c0_i32_0 = arith.constant 0 : i32
    %c0_i32_1 = arith.constant 0 : i32
    return %c0_i32, %c0_i32_0 : i32, i32
  }
  func.func @transform_3(%arg0: i32) -> (i32, i32) {
    %c0_i32 = arith.constant 0 : i32
    %c0_i32_0 = arith.constant 0 : i32
    %c0_i32_1 = arith.constant 0 : i32
    return %c0_i32, %c0_i32_0 : i32, i32
  }
  func.func @transform_4(%arg0: i32) -> (i32, i32, i32) {
    %c0_i32 = arith.constant 0 : i32
    %c0_i32_0 = arith.constant 0 : i32
    %c0_i32_1 = arith.constant 0 : i32
    %c0_i32_2 = arith.constant 0 : i32
    return %c0_i32, %c0_i32_0, %c0_i32_1 : i32, i32, i32
  }
}

</mosaic_0001>

<llo_original>
// kernel: tpu_custom_call.1
$region0: #{tpu_custom_call.1}
  #allocation0 [shape = 'u32[]', space=smem, size = 0x4, offset = 0x4, fixed_abs, tag = 'smem constant byte address 0x4 - core index']
  #allocation1 [shape = 'u32[144,128]{1,0:T(1,128)}', space=vmem, size = 0x12000, scoped, tag = 'internal scratch']
  %s0 = inlined_call_operand.hbm [shape: s32[8,80], index: 0, kind: input, shape index: {}]
  %s1 = inlined_call_operand.hbm [shape: f32[80,256], index: 1, kind: input, shape index: {}]
  %s2 = inlined_call_operand.hbm [shape: f32[128,128], index: 2, kind: input, shape index: {}]
  %s3 = inlined_call_operand.vmem [shape: f32[1,128], index: 3, kind: input, shape index: {}]
  %s4 = inlined_call_operand.hbm [shape: f32[1,8,128], index: 4, kind: output, shape index: {}]
  %s5 = sld [smem:[#allocation0]]
  $region38: #{tpu_custom_call.1} parent=0
    _
  %s7 = ssub.s32 1, %s5
  %s8 = scalar_select 0, %s7, %s5
  $region1: #{tpu_custom_call.1} parent=0
    #allocation2 [shape = 'u8[4096]{0}', space=vmem, size = 0x1000, scoped, tag = 'input window, operand 0, single buffered']
    #allocation3 [shape = 's32[1]{0}', space=sflag, size = 0x4, scoped, tag = 'scoped memory for tpu_custom_call.1']
    #allocation4 [shape = 's32[1]{0}', space=sflag, size = 0x4, scoped, tag = 'scoped memory for tpu_custom_call.1']
    #allocation5 [shape = 'u8[81920]{0}', space=vmem, size = 0x14000, scoped, tag = 'input window, operand 1, single buffered']
    #allocation6 [shape = 's32[1]{0}', space=sflag, size = 0x4, scoped, tag = 'scoped memory for tpu_custom_call.1']
    #allocation7 [shape = 'u8[65536]{0}', space=vmem, size = 0x10000, scoped, tag = 'input window, operand 2, single buffered']
    #allocation8 [shape = 'u8[4096]{0}', space=vmem, size = 0x1000, scoped, tag = 'output window, operand 0, single buffered']
    %9 = vsyncpa [#allocation3], 0
    %10 = vsyncpa [#allocation6], 0
    %11 = vsyncpa [#allocation4], 0
    // Predicated region
    $region2: #{tpu_custom_call.1} parent=1 // pred_check
      _
    $region3: #{tpu_custom_call.1} parent=1 // pred_check_branch
      %13 = sbr.rel (0) target = $region5
    $region4: #{tpu_custom_call.1} parent=1 // pred_region
      %s15 = ssub.s32 128, 128
      %16 = vsyncadd [#allocation3], %s15
      %s18 = sshll.u32 [#allocation2], 4
      %s19 = int_to_ptr.vmem [resolvable:$true] %s18
      %21 = dma.hbm_to_vmem [thread:$0]  %s0, 128, %s19, [#allocation3]
    $region5: #{tpu_custom_call.1} parent=1 // pred_fallthru
      _
    // Predicated region
    $region6: #{tpu_custom_call.1} parent=1 // pred_check
      _
    $region7: #{tpu_custom_call.1} parent=1 // pred_check_branch
      %23 = sbr.rel (0) target = $region9
    $region8: #{tpu_custom_call.1} parent=1 // pred_region
      %s25 = ssub.s32 2560, 2560
      %26 = vsyncadd [#allocation6], %s25
      %s27 = sshll.u32 [#allocation5], 4
      %s28 = int_to_ptr.vmem [resolvable:$true] %s27
      %33 = dma.hbm_to_vmem [thread:$0]  %s1, 2560, %s28, [#allocation6], 256, 256, 16
    $region9: #{tpu_custom_call.1} parent=1 // pred_fallthru
      _
    // Predicated region
    $region10: #{tpu_custom_call.1} parent=1 // pred_check
      _
    $region11: #{tpu_custom_call.1} parent=1 // pred_check_branch
      %35 = sbr.rel (0) target = $region13
    $region12: #{tpu_custom_call.1} parent=1 // pred_region
      %s37 = ssub.s32 2048, 2048
      %38 = vsyncadd [#allocation6], %s37
      %s39 = sshll.u32 [#allocation7], 4
      %s40 = int_to_ptr.vmem [resolvable:$true] %s39
      %45 = dma.hbm_to_vmem [thread:$0]  %s2, 2048, %s40, [#allocation6], 128, 128, 8
    $region13: #{tpu_custom_call.1} parent=1 // pred_fallthru
      _
    // Predicated region
    $region14: #{tpu_custom_call.1} parent=1 // pred_check
      _
    $region15: #{tpu_custom_call.1} parent=1 // pred_check_branch
      %47 = sbr.rel (0) target = $region17
    $region16: #{tpu_custom_call.1} parent=1 // pred_region
      _
    $region17: #{tpu_custom_call.1} parent=1 // pred_fallthru
      _
    // Predicated region
    $region18: #{tpu_custom_call.1} parent=1 // pred_check
      _
    $region19: #{tpu_custom_call.1} parent=1 // pred_check_branch
      %49 = sbr.rel (0) target = $region21
    $region20: #{tpu_custom_call.1} parent=1 // pred_region
      %50 = dma.done [#allocation3], 128
    $region21: #{tpu_custom_call.1} parent=1 // pred_fallthru
      _
    // Predicated region
    $region22: #{tpu_custom_call.1} parent=1 // pred_check
      _
    $region23: #{tpu_custom_call.1} parent=1 // pred_check_branch
      %52 = sbr.rel (0) target = $region25
    $region24: #{tpu_custom_call.1} parent=1 // pred_region
      %53 = dma.done [#allocation6], 2560
    $region25: #{tpu_custom_call.1} parent=1 // pred_fallthru
      _
    // Predicated region
    $region26: #{tpu_custom_call.1} parent=1 // pred_check
      _
    $region27: #{tpu_custom_call.1} parent=1 // pred_check_branch
      %55 = sbr.rel (0) target = $region29
    $region28: #{tpu_custom_call.1} parent=1 // pred_region
      %56 = dma.done [#allocation6], 2048
    $region29: #{tpu_custom_call.1} parent=1 // pred_fallthru
      _
    %v57 = vlaneseq
    %v58 = vand.u32 %v57, 127
    %v59 = vld [vmem:[#allocation2] sm:$0xff]
    %vm60 = vcmp.eq.s32.totalorder %v58, %v59
    %v61 = vsel %vm60, 1, 0
    %v62 = vcvt.s32.f32 %v61
    %v63 = vld [vmem:[#allocation5] sm:$0xff]
    %v64 = vld [vmem:[#allocation5 + $0x8] sm:$0xff]
    %v65 = vld [vmem:[#allocation5 + $0x10] sm:$0xff]
    %v66 = vld [vmem:[#allocation5 + $0x18] sm:$0xff]
    %v67 = vld [vmem:[#allocation5 + $0x20] sm:$0xff]
    %v68 = vld [vmem:[#allocation5 + $0x28] sm:$0xff]
    %v69 = vld [vmem:[#allocation5 + $0x30] sm:$0xff]
    %v70 = vld [vmem:[#allocation5 + $0x38] sm:$0xff]
    %v71 = vld [vmem:[#allocation5 + $0x40] sm:$0xff]
    %v72 = vld [vmem:[#allocation5 + $0x48] sm:$0xff]
    %v73 = vld [vmem:[#allocation5 + $0x50] sm:$0xff]
    %v74 = vld [vmem:[#allocation5 + $0x58] sm:$0xff]
    %v75 = vld [vmem:[#allocation5 + $0x60] sm:$0xff]
    %v76 = vld [vmem:[#allocation5 + $0x68] sm:$0xff]
    %v77 = vld [vmem:[#allocation5 + $0x70] sm:$0xff]
    %v78 = vld [vmem:[#allocation5 + $0x78] sm:$0xff]
    %v79 = vld [vmem:[#allocation5 + $0x80] sm:$0xff]
    %v80 = vld [vmem:[#allocation5 + $0x88] sm:$0xff]
    %v81 = vld [vmem:[#allocation5 + $0x90] sm:$0xff]
    %v82 = vld [vmem:[#allocation5 + $0x98] sm:$0xff]
    %vm83 = vcmask 654336
    %v85 = vsel %vm83, %v62, 0
    %87 = vmatprep.subr.mxu0 0.0
    %88 = vmatpush1.msra.mxu0 0.0
    %89 = vmatprep.subr.mxu0 0.0
    %90 = vmatpush1.msra.mxu0 0.0
    %91 = vmatprep.subr.mxu0 0.0
    %92 = vmatpush1.msra.mxu0 0.0
    %93 = vmatprep.subr.mxu0 0.0
    %94 = vmatpush1.msra.mxu0 0.0
    %95 = vmatprep.subr.mxu0 0.0
    %96 = vmatpush1.msra.mxu0 0.0
    %97 = vmatprep.subr.mxu0 0.0
    %98 = vmatpush1.msra.mxu0 0.0
    %99 = vmatprep.subr.mxu0 %v82
    %100 = vmatpush1.msra.mxu0 %v81
    %101 = vmatprep.subr.mxu0 %v80
    %102 = vmatpush1.msra.mxu0 %v79
    %103 = vmatprep.subr.mxu0 %v78
    %104 = vmatpush1.msra.mxu0 %v77
    %105 = vmatprep.subr.mxu0 %v76
    %106 = vmatpush1.msra.mxu0 %v75
    %107 = vmatprep.subr.mxu0 %v74
    %108 = vmatpush1.msra.mxu0 %v73
    %109 = vmatprep.subr.mxu0 %v72
    %110 = vmatpush1.msra.mxu0 %v71
    %111 = vmatprep.subr.mxu0 %v70
    %112 = vmatpush1.msra.mxu0 %v69
    %113 = vmatprep.subr.mxu0 %v68
    %114 = vmatpush1.msra.mxu0 %v67
    %115 = vmatprep.subr.mxu0 %v66
    %116 = vmatpush1.msra.mxu0 %v65
    %117 = vmatprep.subr.mxu0 %v64
    %118 = vmatpush1.msra.mxu0 %v63
    %119 = vmatprep.subr.mxu0 0.0
    %120 = vmatpush2.msra.mxu0 0.0
    %121 = vmatprep.subr.mxu0 0.0
    %122 = vmatpush2.msra.mxu0 0.0
    %123 = vmatprep.subr.mxu0 0.0
    %124 = vmatpush2.msra.mxu0 0.0
    %125 = vmatprep.subr.mxu0 0.0
    %126 = vmatpush2.msra.mxu0 0.0
    %127 = vmatprep.subr.mxu0 0.0
    %128 = vmatpush2.msra.mxu0 0.0
    %129 = vmatprep.subr.mxu0 0.0
    %130 = vmatpush2.msra.mxu0 0.0
    %131 = vmatprep.subr.mxu0 0.0
    %132 = vmatpush2.msra.mxu0 0.0
    %133 = vmatprep.subr.mxu0 0.0
    %134 = vmatpush2.msra.mxu0 0.0
    %135 = vmatprep.subr.mxu0 0.0
    %136 = vmatpush2.msra.mxu0 0.0
    %137 = vmatprep.subr.mxu0 0.0
    %138 = vmatpush2.msra.mxu0 0.0
    %139 = vmatprep.subr.mxu0 0.0
    %140 = vmatpush2.msra.mxu0 0.0
    %141 = vmatprep.subr.mxu0 0.0
    %142 = vmatpush2.msra.mxu0 0.0
    %143 = vmatprep.subr.mxu0 0.0
    %144 = vmatpush2.msra.mxu0 0.0
    %145 = vmatprep.subr.mxu0 0.0
    %146 = vmatpush2.msra.mxu0 0.0
    %147 = vmatprep.subr.mxu0 0.0
    %148 = vmatpush2.msra.mxu0 0.0
    %149 = vmatprep.subr.mxu0 0.0
    %150 = vmatpush2.msra.mxu0 0.0
    %151 = vmatprep.mubr.f32.mxu0 0.0
    %152 = vmatmul.mubr.f32.gmra.mxu0 %v85
    %v153 = vpop.f32.mrf.mxu0
    %v154 = vadd.f32 0.0, %v153
    %v155 = vpop.f32.mrf.mxu0
    %v156 = vadd.f32 0.0, %v155
    %157 = vdwg.mxu0
    %v158 = vmul.f32 %v154, %v156
    %v159 = vtanh.pop %v158
    %v160 = vld [vmem:[#allocation7] sm:$0xff]
    %v161 = vld [vmem:[#allocation7 + $0x8] sm:$0xff]
    %v162 = vld [vmem:[#allocation7 + $0x10] sm:$0xff]
    %v163 = vld [vmem:[#allocation7 + $0x18] sm:$0xff]
    %v164 = vld [vmem:[#allocation7 + $0x20] sm:$0xff]
    %v165 = vld [vmem:[#allocation7 + $0x28] sm:$0xff]
    %v166 = vld [vmem:[#allocation7 + $0x30] sm:$0xff]
    %v167 = vld [vmem:[#allocation7 + $0x38] sm:$0xff]
    %v168 = vld [vmem:[#allocation7 + $0x40] sm:$0xff]
    %v169 = vld [vmem:[#allocation7 + $0x48] sm:$0xff]
    %v170 = vld [vmem:[#allocation7 + $0x50] sm:$0xff]
    %v171 = vld [vmem:[#allocation7 + $0x58] sm:$0xff]
    %v172 = vld [vmem:[#allocation7 + $0x60] sm:$0xff]
    %v173 = vld [vmem:[#allocation7 + $0x68] sm:$0xff]
    %v174 = vld [vmem:[#allocation7 + $0x70] sm:$0xff]
    %v175 = vld [vmem:[#allocation7 + $0x78] sm:$0xff]
    %v176 = vld [vmem:[%s3] sm:$0x1]
    %v178 = vlaneseq
    %v179 = vshrl.u32 %v178, 7
    %v180 = vsub.s32 0, %v179
    %v181 = vrot.slane %v176, %v180
    %183 = vmatprep.subr.mxu0 0.0
    %184 = vmatpush1.msra.mxu0 %v175
    %185 = vmatprep.subr.mxu0 0.0
    %186 = vmatpush1.msra.mxu0 %v174
    %187 = vmatprep.subr.mxu0 0.0
    %188 = vmatpush1.msra.mxu0 %v173
    %189 = vmatprep.subr.mxu0 0.0
    %190 = vmatpush1.msra.mxu0 %v172
    %191 = vmatprep.subr.mxu0 0.0
    %192 = vmatpush1.msra.mxu0 %v171
    %193 = vmatprep.subr.mxu0 0.0
    %194 = vmatpush1.msra.mxu0 %v170
    %195 = vmatprep.subr.mxu0 0.0
    %196 = vmatpush1.msra.mxu0 %v169
    %197 = vmatprep.subr.mxu0 0.0
    %198 = vmatpush1.msra.mxu0 %v168
    %199 = vmatprep.subr.mxu0 0.0
    %200 = vmatpush1.msra.mxu0 %v167
    %201 = vmatprep.subr.mxu0 0.0
    %202 = vmatpush1.msra.mxu0 %v166
    %203 = vmatprep.subr.mxu0 0.0
    %204 = vmatpush1.msra.mxu0 %v165
    %205 = vmatprep.subr.mxu0 0.0
    %206 = vmatpush1.msra.mxu0 %v164
    %207 = vmatprep.subr.mxu0 0.0
    %208 = vmatpush1.msra.mxu0 %v163
    %209 = vmatprep.subr.mxu0 0.0
    %210 = vmatpush1.msra.mxu0 %v162
    %211 = vmatprep.subr.mxu0 0.0
    %212 = vmatpush1.msra.mxu0 %v161
    %213 = vmatprep.subr.mxu0 0.0
    %214 = vmatpush1.msra.mxu0 %v160
    %215 = vmatprep.subr.mxu0 0.0
    %216 = vmatpush2.msra.mxu0 0.0
    %217 = vmatprep.subr.mxu0 0.0
    %218 = vmatpush2.msra.mxu0 0.0
    %219 = vmatprep.subr.mxu0 0.0
    %220 = vmatpush2.msra.mxu0 0.0
    %221 = vmatprep.subr.mxu0 0.0
    %222 = vmatpush2.msra.mxu0 0.0
    %223 = vmatprep.subr.mxu0 0.0
    %224 = vmatpush2.msra.mxu0 0.0
    %225 = vmatprep.subr.mxu0 0.0
    %226 = vmatpush2.msra.mxu0 0.0
    %227 = vmatprep.subr.mxu0 0.0
    %228 = vmatpush2.msra.mxu0 0.0
    %229 = vmatprep.subr.mxu0 0.0
    %230 = vmatpush2.msra.mxu0 0.0
    %231 = vmatprep.subr.mxu0 0.0
    %232 = vmatpush2.msra.mxu0 0.0
    %233 = vmatprep.subr.mxu0 0.0
    %234 = vmatpush2.msra.mxu0 0.0
    %235 = vmatprep.subr.mxu0 0.0
    %236 = vmatpush2.msra.mxu0 0.0
    %237 = vmatprep.subr.mxu0 0.0
    %238 = vmatpush2.msra.mxu0 0.0
    %239 = vmatprep.subr.mxu0 0.0
    %240 = vmatpush2.msra.mxu0 0.0
    %241 = vmatprep.subr.mxu0 0.0
    %242 = vmatpush2.msra.mxu0 0.0
    %243 = vmatprep.subr.mxu0 0.0
    %244 = vmatpush2.msra.mxu0 0.0
    %245 = vmatprep.subr.mxu0 0.0
    %246 = vmatpush2.msra.mxu0 0.0
    %247 = vmatprep.mubr.f32.mxu0 0.0
    %248 = vmatmul.mubr.f32.gmra.mxu0 %v159
    %v249 = vpop.f32.mrf.mxu0
    %v250 = vadd.f32 %v181, %v249
    %v251 = vpop.f32.mrf.mxu0
    %252 = vdwg.mxu0
    %253 = vst [vmem:[#allocation8] sm:$0xff] %v250
    // Predicated region
    $region30: #{tpu_custom_call.1} parent=1 // pred_check
      _
    $region31: #{tpu_custom_call.1} parent=1 // pred_check_branch
      %255 = sbr.rel (0) target = $region33
    $region32: #{tpu_custom_call.1} parent=1 // pred_region
      %s257 = ssub.s32 128, 128
      %258 = vsyncadd [#allocation4], %s257
      %s260 = sshll.u32 [#allocation8], 4
      %s261 = int_to_ptr.vmem [resolvable:$true] %s260
      %263 = dma.vmem_to_hbm [thread:$0]  %s261, 128, %s4, [#allocation4]
    $region33: #{tpu_custom_call.1} parent=1 // pred_fallthru
      _
    // Predicated region
    $region34: #{tpu_custom_call.1} parent=1 // pred_check
      _
    $region35: #{tpu_custom_call.1} parent=1 // pred_check_branch
      %265 = sbr.rel (0) target = $region37
    $region36: #{tpu_custom_call.1} parent=1 // pred_region
      %266 = dma.done [#allocation4], 128
    $region37: #{tpu_custom_call.1} parent=1 // pred_fallthru
      _
    %267 = vsyncpa [#allocation3], 1
    %268 = vsyncpa [#allocation6], 1
    %269 = vsyncpa [#allocation4], 1

</llo_original>
